<compile_context>
chip_gen: v7x
topology: tpu7x:2x2x1
jax: 0.10.0
libtpu: 0.0.40
codegen_flags: <defaults>
</compile_context>

<pallas_src>
import jax
import jax.numpy as jnp
from jax.experimental import pallas as pl
from jax.experimental.pallas import tpu as pltpu


# ----------------------------------------------------------------------------
# Kernel
# ----------------------------------------------------------------------------
def boundry_kernel(idx_ref, ep_ref,
                   w_ep_ref, lvl_h1_ref, stg_h1_ref, w1_ep_ref,
                   w2_ref, w3_ref, wc_ref, bias_ref, out_ref):
    f32 = jnp.float32
    tb = idx_ref.shape[1]              # batch tile on the lane axis

    # Packed biases, feature-major (rows): [b_ep(16) | b2(16) | b3(8) | bc(2)]
    b_ep = bias_ref[0:16, :]           # (16, 1)
    b2   = bias_ref[16:32, :]          # (16, 1)
    b3   = bias_ref[32:40, :]          # (8, 1)
    bc   = bias_ref[40:42, :]          # (2, 1)

    # In-kernel embedding gathers as one-hot matmuls (exact: one 1.0 / column).
    lvl_idx = idx_ref[0:1, :]          # (1, tb) int32: pre_stage*5 + pre_level
    stg_idx = idx_ref[1:2, :]          # (1, tb) int32: target_stage
    lvl_oh = (jax.lax.broadcasted_iota(jnp.int32, (60, tb), 0) == lvl_idx).astype(f32)
    stg_oh = (jax.lax.broadcasted_iota(jnp.int32, (8, tb), 0) == stg_idx).astype(f32)

    # linear1 pre-activation.  Level/stage contributions come straight from the
    # pre-folded tables (project + tanh + W1-slice + b1 already applied).
    h1 = jnp.dot(lvl_h1_ref[...], lvl_oh, preferred_element_type=f32)      # (32, tb)
    h1 = h1 + jnp.dot(stg_h1_ref[...], stg_oh, preferred_element_type=f32)

    # ep branch (data dependent, cannot be folded).
    ep = jnp.tanh(
        jnp.dot(w_ep_ref[...], ep_ref[...], preferred_element_type=f32) + b_ep)
    h1 = h1 + jnp.dot(w1_ep_ref[...], ep, preferred_element_type=f32)

    h = jnp.tanh(h1)                                                        # (32, tb)
    h = jnp.tanh(jnp.dot(w2_ref[...], h, preferred_element_type=f32) + b2)  # (16, tb)
    h = jnp.tanh(jnp.dot(w3_ref[...], h, preferred_element_type=f32) + b3)  # (8, tb)

    # cls + 2-class softmax as an exact logistic on the logit difference.
    logits = jnp.dot(wc_ref[...], h, preferred_element_type=f32) + bc       # (2, tb)
    d = logits[1:2, :] - logits[0:1, :]
    e = jnp.exp(-d)
    p1 = 1.0 / (1.0 + e)
    p0 = e * p1
    # Lane-dense, unmasked stores (one full row each).
    out_ref[0:1, :] = p0
    out_ref[1:2, :] = p1


# ----------------------------------------------------------------------------
# Parameters (PyTorch nn.Linear layout: weight (out, in), bias (out,))
# ----------------------------------------------------------------------------
def init_params(key, num_ep):
    ks = jax.random.split(key, 16)

    def lin(kw, kb, fan_in, fan_out):
        bound = 1.0 / jnp.sqrt(fan_in)
        w = jax.random.uniform(kw, (fan_out, fan_in), jnp.float32, -bound, bound)
        b = jax.random.uniform(kb, (fan_out,), jnp.float32, -bound, bound)
        return w, b

    params = {}
    params["w_ep"], params["b_ep"] = lin(ks[0], ks[1], num_ep, 16)
    params["stage_embed"] = jax.random.normal(ks[2], (8, 16), jnp.float32)
    params["level_embed"] = jax.random.normal(ks[3], (60, 16), jnp.float32)
    params["w_proj"], params["b_proj"] = lin(ks[4], ks[5], 16, 16)
    params["w1"], params["b1"] = lin(ks[6], ks[7], 48, 32)
    params["w2"], params["b2"] = lin(ks[8], ks[9], 32, 16)
    params["w3"], params["b3"] = lin(ks[10], ks[11], 16, 8)
    params["wc"], params["bc"] = lin(ks[12], ks[13], 8, 2)
    return params


# ----------------------------------------------------------------------------
# Wrapper
# ----------------------------------------------------------------------------
def _round_up(x, m):
    return ((x + m - 1) // m) * m


def _vmem_limit_bytes():
    # Generation-aware: v7x has 64 MiB physical VMEM, v5e/v6e 128 MiB.
    try:
        cap = pltpu.get_tpu_info().vmem_capacity_bytes
    except Exception:
        cap = 64 << 20
    return int(min(cap * 3 // 4, 96 << 20))


_VMEM_LIMIT_BYTES = _vmem_limit_bytes()
_MAX_TILE_B = 8192


def boundry_forward(params, pre_stage, target_stage, pre_level, ep_feature):
    B, num_ep = ep_feature.shape
    f32 = jnp.float32

    # ---- Algebraic fold (exact: gather commutes with row-wise ops) ----------
    # tanh(level_embed @ Wp^T + bp)                               -> (60, 16)
    lvl_fused = jnp.tanh(
        params["level_embed"] @ params["w_proj"].T + params["b_proj"])
    # linear1 contributions of the two embedding branches, b1 folded once.
    lvl_h1T = (lvl_fused @ params["w1"][:, 0:16].T + params["b1"]).T          # (32, 60)
    stg_h1T = (params["stage_embed"] @ params["w1"][:, 16:32].T).T            # (32, 8)
    w1_ep = params["w1"][:, 32:48]                                            # (32, 16)

    # Packed biases, feature-major: [b_ep | b2 | b3 | bc] -> (42, 1)
    biases = jnp.concatenate(
        [params["b_ep"], params["b2"], params["b3"], params["bc"]]).reshape(-1, 1)

    # ---- Feature-major activation streams -----------------------------------
    pre_stage_level = (pre_stage * 5 + pre_level).astype(jnp.int32)
    idx_fm = jnp.stack(
        [pre_stage_level, target_stage.astype(jnp.int32)], axis=0)           # (2, B)
    ep_fm = ep_feature.astype(f32).T                                          # (num_ep, B)

    # ---- Batch tiling on the lane axis ---------------------------------------
    b128 = _round_up(max(B, 1), 128)
    if b128 <= 256:
        tile_b = b128
    else:
        # >= 2 grid steps so v7x megacore splits the batch; cap the tile size.
        tile_b = min(_MAX_TILE_B, _round_up((b128 + 1) // 2, 128))
    B_pad = _round_up(b128, tile_b)
    if B_pad != B:
        pad = B_pad - B
        idx_fm = jnp.pad(idx_fm, ((0, 0), (0, pad)))   # index 0 is a valid row
        ep_fm = jnp.pad(ep_fm, ((0, 0), (0, pad)))
    grid = (B_pad // tile_b,)

    def batch_spec(rows):
        return pl.BlockSpec((rows, tile_b), lambda i: (0, i))

    def resident(rows, cols):
        return pl.BlockSpec((rows, cols), lambda i: (0, 0))   # VMEM-resident

    out_t = pl.pallas_call(
        boundry_kernel,
        out_shape=jax.ShapeDtypeStruct((2, B_pad), f32),
        grid=grid,
        in_specs=[
            batch_spec(2),                 # idx (int32), feature-major
            batch_spec(num_ep),            # ep_feature^T
            resident(16, num_ep),          # w_ep        (out, in)
            resident(32, 60),              # folded level->h1 table^T (b1 inside)
            resident(32, 8),               # folded stage->h1 table^T
            resident(32, 16),              # w1[:, 32:48] (ep slice)
            resident(16, 32),              # w2
            resident(8, 16),               # w3
            resident(2, 8),                # wc
            resident(42, 1),               # packed biases
        ],
        out_specs=pl.BlockSpec((2, tile_b), lambda i: (0, i)),
        compiler_params=pltpu.CompilerParams(
            dimension_semantics=("parallel",),
            vmem_limit_bytes=_VMEM_LIMIT_BYTES),
    )(idx_fm, ep_fm,
      params["w_ep"], lvl_h1T, stg_h1T, w1_ep,
      params["w2"], params["w3"], params["wc"], biases)

    return out_t[:, :B].T                                                    # (B, 2)


# ----------------------------------------------------------------------------
# Pure-JAX reference (mirrors the PyTorch forward exactly)
# ----------------------------------------------------------------------------
def boundry_forward_ref(params, pre_stage, target_stage, pre_level, ep_feature):
    tse = params["stage_embed"][target_stage.astype(jnp.int32)]
    idx = (pre_stage * 5 + pre_level).astype(jnp.int32)
    lsf = params["level_embed"][idx]
    ep = jnp.tanh(ep_feature @ params["w_ep"].T + params["b_ep"])
    lsf = jnp.tanh(lsf @ params["w_proj"].T + params["b_proj"])
    feat = jnp.concatenate([lsf, tse, ep], axis=-1)
    feat = jnp.tanh(feat @ params["w1"].T + params["b1"])
    feat = jnp.tanh(feat @ params["w2"].T + params["b2"])
    feat = jnp.tanh(feat @ params["w3"].T + params["b3"])
    logits = feat @ params["wc"].T + params["bc"]
    return jax.nn.softmax(logits, axis=-1)


if __name__ == "__main__":
    num_ep = 12
    key = jax.random.PRNGKey(0)
    kp, k1, k2, k3, k4 = jax.random.split(key, 5)
    params = init_params(kp, num_ep)

    def make_inputs(B, ka, kb, kc, kd):
        # pre_stage in [0,7], pre_level in [0,4] => pre_stage*5 + pre_level < 60
        pre_stage = jax.random.randint(ka, (B,), 0, 8).astype(jnp.float32)
        pre_level = jax.random.randint(kb, (B,), 0, 5).astype(jnp.float32)
        target_stage = jax.random.randint(kc, (B,), 0, 8)
        ep_feature = jax.random.normal(kd, (B, num_ep), jnp.float32)
        return pre_stage, target_stage, pre_level, ep_feature

    # Small batch.
    args8 = make_inputs(8, k1, k2, k3, k4)
    out8 = jax.block_until_ready(boundry_forward(params, *args8))
    ref8 = boundry_forward_ref(params, *args8)
    assert out8.shape == (8, 2)
    assert jnp.allclose(out8, ref8, atol=1e-5, rtol=1e-5), "mismatch (B=8)"

    # Unaligned batch (exercises the pad-and-slice tail path).
    args13 = make_inputs(13, k4, k3, k2, k1)
    out13 = jax.block_until_ready(boundry_forward(params, *args13))
    ref13 = boundry_forward_ref(params, *args13)
    assert out13.shape == (13, 2)
    assert jnp.allclose(out13, ref13, atol=1e-5, rtol=1e-5), "mismatch (B=13)"

    print("KERNEL_OK")
</pallas_src>

<mosaic_0001>
module attributes {stable_mosaic.version = 11 : i64} {
  func.func @boundry_kernel(%arg0: i32, %arg1: memref<2x128xi32, #tpu.memory_space<vmem>>, %arg2: memref<12x128xf32, #tpu.memory_space<vmem>>, %arg3: memref<16x12xf32, #tpu.memory_space<vmem>>, %arg4: memref<32x60xf32, #tpu.memory_space<vmem>>, %arg5: memref<32x8xf32, #tpu.memory_space<vmem>>, %arg6: memref<32x16xf32, #tpu.memory_space<vmem>>, %arg7: memref<16x32xf32, #tpu.memory_space<vmem>>, %arg8: memref<8x16xf32, #tpu.memory_space<vmem>>, %arg9: memref<2x8xf32, #tpu.memory_space<vmem>>, %arg10: memref<42x1xf32, #tpu.memory_space<vmem>>, %arg11: memref<2x128xf32, #tpu.memory_space<vmem>>) attributes {dimension_semantics = [#tpu.dimension_semantics<parallel>], iteration_bounds = array<i64: 1>, scalar_prefetch = 0 : i64, scratch_operands = 0 : i64, tpu.core_type = #tpu.core_type<tc>, window_params = [{transform_indices = @transform_0, window_bounds = array<i64: 2, 128>}, {transform_indices = @transform_1, window_bounds = array<i64: 12, 128>}, {pipeline_mode = #tpu.pipeline_mode<synchronous>, transform_indices = @transform_2, window_bounds = array<i64: 16, 12>}, {pipeline_mode = #tpu.pipeline_mode<synchronous>, transform_indices = @transform_3, window_bounds = array<i64: 32, 60>}, {pipeline_mode = #tpu.pipeline_mode<synchronous>, transform_indices = @transform_4, window_bounds = array<i64: 32, 8>}, {pipeline_mode = #tpu.pipeline_mode<synchronous>, transform_indices = @transform_5, window_bounds = array<i64: 32, 16>}, {pipeline_mode = #tpu.pipeline_mode<synchronous>, transform_indices = @transform_6, window_bounds = array<i64: 16, 32>}, {pipeline_mode = #tpu.pipeline_mode<synchronous>, transform_indices = @transform_7, window_bounds = array<i64: 8, 16>}, {pipeline_mode = #tpu.pipeline_mode<synchronous>, transform_indices = @transform_8, window_bounds = array<i64: 2, 8>}, {pipeline_mode = #tpu.pipeline_mode<synchronous>, transform_indices = @transform_9, window_bounds = array<i64: 42, 1>}, {transform_indices = @transform_10, window_bounds = array<i64: 2, 128>}]} {
    %c0 = arith.constant 0 : index
    %c0_0 = arith.constant 0 : index
    %0 = vector.load %arg10[%c0, %c0_0] : memref<42x1xf32, #tpu.memory_space<vmem>>, vector<16x1xf32>
    %c16 = arith.constant 16 : index
    %c0_1 = arith.constant 0 : index
    %1 = vector.load %arg10[%c16, %c0_1] : memref<42x1xf32, #tpu.memory_space<vmem>>, vector<16x1xf32>
    %c32 = arith.constant 32 : index
    %c0_2 = arith.constant 0 : index
    %2 = vector.load %arg10[%c32, %c0_2] : memref<42x1xf32, #tpu.memory_space<vmem>>, vector<8x1xf32>
    %c40 = arith.constant 40 : index
    %c0_3 = arith.constant 0 : index
    %3 = vector.load %arg10[%c40, %c0_3] : memref<42x1xf32, #tpu.memory_space<vmem>>, vector<2x1xf32>
    %c0_4 = arith.constant 0 : index
    %c0_5 = arith.constant 0 : index
    %4 = vector.load %arg1[%c0_4, %c0_5] : memref<2x128xi32, #tpu.memory_space<vmem>>, vector<1x128xi32>
    %c1 = arith.constant 1 : index
    %c0_6 = arith.constant 0 : index
    %5 = vector.load %arg1[%c1, %c0_6] : memref<2x128xi32, #tpu.memory_space<vmem>>, vector<1x128xi32>
    %6 = tpu.iota {dimensions = array<i32: 0>} : vector<60x128xi32>
    %7 = vector.broadcast %4 : vector<1x128xi32> to vector<60x128xi32>
    %8 = arith.cmpi eq, %6, %7 : vector<60x128xi32>
    %9 = arith.extui %8 : vector<60x128xi1> to vector<60x128xi32>
    %10 = arith.sitofp %9 : vector<60x128xi32> to vector<60x128xf32>
    %11 = tpu.iota {dimensions = array<i32: 0>} : vector<8x128xi32>
    %12 = vector.broadcast %5 : vector<1x128xi32> to vector<8x128xi32>
    %13 = arith.cmpi eq, %11, %12 : vector<8x128xi32>
    %14 = arith.extui %13 : vector<8x128xi1> to vector<8x128xi32>
    %15 = arith.sitofp %14 : vector<8x128xi32> to vector<8x128xf32>
    %c0_7 = arith.constant 0 : index
    %c0_8 = arith.constant 0 : index
    %16 = vector.load %arg4[%c0_7, %c0_8] : memref<32x60xf32, #tpu.memory_space<vmem>>, vector<32x60xf32>
    %cst = arith.constant dense<0.000000e+00> : vector<32x128xf32>
    %17 = tpu.matmul %16, %10, %cst {dimension_numbers = #tpu.dot_dimension_numbers<[1], [0], [0], [1], [0, 0, 1, 1], [], []>} : vector<32x60xf32>, vector<60x128xf32>, vector<32x128xf32> -> vector<32x128xf32>
    %c0_9 = arith.constant 0 : index
    %c0_10 = arith.constant 0 : index
    %18 = vector.load %arg5[%c0_9, %c0_10] : memref<32x8xf32, #tpu.memory_space<vmem>>, vector<32x8xf32>
    %cst_11 = arith.constant dense<0.000000e+00> : vector<32x128xf32>
    %19 = tpu.matmul %18, %15, %cst_11 {dimension_numbers = #tpu.dot_dimension_numbers<[1], [0], [0], [1], [0, 0, 1, 1], [], []>} : vector<32x8xf32>, vector<8x128xf32>, vector<32x128xf32> -> vector<32x128xf32>
    %20 = arith.addf %17, %19 : vector<32x128xf32>
    %c0_12 = arith.constant 0 : index
    %c0_13 = arith.constant 0 : index
    %21 = vector.load %arg3[%c0_12, %c0_13] : memref<16x12xf32, #tpu.memory_space<vmem>>, vector<16x12xf32>
    %c0_14 = arith.constant 0 : index
    %c0_15 = arith.constant 0 : index
    %22 = vector.load %arg2[%c0_14, %c0_15] : memref<12x128xf32, #tpu.memory_space<vmem>>, vector<12x128xf32>
    %cst_16 = arith.constant dense<0.000000e+00> : vector<16x128xf32>
    %23 = tpu.matmul %21, %22, %cst_16 {dimension_numbers = #tpu.dot_dimension_numbers<[1], [0], [0], [1], [0, 0, 1, 1], [], []>} : vector<16x12xf32>, vector<12x128xf32>, vector<16x128xf32> -> vector<16x128xf32>
    %24 = vector.broadcast %0 : vector<16x1xf32> to vector<16x128xf32>
    %25 = arith.addf %23, %24 : vector<16x128xf32>
    %26 = math.tanh %25 : vector<16x128xf32>
    %c0_17 = arith.constant 0 : index
    %c0_18 = arith.constant 0 : index
    %27 = vector.load %arg6[%c0_17, %c0_18] : memref<32x16xf32, #tpu.memory_space<vmem>>, vector<32x16xf32>
    %cst_19 = arith.constant dense<0.000000e+00> : vector<32x128xf32>
    %28 = tpu.matmul %27, %26, %cst_19 {dimension_numbers = #tpu.dot_dimension_numbers<[1], [0], [0], [1], [0, 0, 1, 1], [], []>} : vector<32x16xf32>, vector<16x128xf32>, vector<32x128xf32> -> vector<32x128xf32>
    %29 = arith.addf %20, %28 : vector<32x128xf32>
    %30 = math.tanh %29 : vector<32x128xf32>
    %c0_20 = arith.constant 0 : index
    %c0_21 = arith.constant 0 : index
    %31 = vector.load %arg7[%c0_20, %c0_21] : memref<16x32xf32, #tpu.memory_space<vmem>>, vector<16x32xf32>
    %cst_22 = arith.constant dense<0.000000e+00> : vector<16x128xf32>
    %32 = tpu.matmul %31, %30, %cst_22 {dimension_numbers = #tpu.dot_dimension_numbers<[1], [0], [0], [1], [0, 0, 1, 1], [], []>} : vector<16x32xf32>, vector<32x128xf32>, vector<16x128xf32> -> vector<16x128xf32>
    %33 = vector.broadcast %1 : vector<16x1xf32> to vector<16x128xf32>
    %34 = arith.addf %32, %33 : vector<16x128xf32>
    %35 = math.tanh %34 : vector<16x128xf32>
    %c0_23 = arith.constant 0 : index
    %c0_24 = arith.constant 0 : index
    %36 = vector.load %arg8[%c0_23, %c0_24] : memref<8x16xf32, #tpu.memory_space<vmem>>, vector<8x16xf32>
    %cst_25 = arith.constant dense<0.000000e+00> : vector<8x128xf32>
    %37 = tpu.matmul %36, %35, %cst_25 {dimension_numbers = #tpu.dot_dimension_numbers<[1], [0], [0], [1], [0, 0, 1, 1], [], []>} : vector<8x16xf32>, vector<16x128xf32>, vector<8x128xf32> -> vector<8x128xf32>
    %38 = vector.broadcast %2 : vector<8x1xf32> to vector<8x128xf32>
    %39 = arith.addf %37, %38 : vector<8x128xf32>
    %40 = math.tanh %39 : vector<8x128xf32>
    %c0_26 = arith.constant 0 : index
    %c0_27 = arith.constant 0 : index
    %41 = vector.load %arg9[%c0_26, %c0_27] : memref<2x8xf32, #tpu.memory_space<vmem>>, vector<2x8xf32>
    %cst_28 = arith.constant dense<0.000000e+00> : vector<2x128xf32>
    %42 = tpu.matmul %41, %40, %cst_28 {dimension_numbers = #tpu.dot_dimension_numbers<[1], [0], [0], [1], [0, 0, 1, 1], [], []>} : vector<2x8xf32>, vector<8x128xf32>, vector<2x128xf32> -> vector<2x128xf32>
    %43 = vector.broadcast %3 : vector<2x1xf32> to vector<2x128xf32>
    %44 = arith.addf %42, %43 : vector<2x128xf32>
    %45 = vector.extract_strided_slice %44 {offsets = [1, 0], sizes = [1, 128], strides = [1, 1]} : vector<2x128xf32> to vector<1x128xf32>
    %46 = vector.extract_strided_slice %44 {offsets = [0, 0], sizes = [1, 128], strides = [1, 1]} : vector<2x128xf32> to vector<1x128xf32>
    %47 = arith.subf %45, %46 : vector<1x128xf32>
    %cst_29 = arith.constant 0.000000e+00 : f32
    %48 = vector.broadcast %cst_29 : f32 to vector<1x128xf32>
    %49 = arith.subf %48, %47 : vector<1x128xf32>
    %50 = math.exp %49 : vector<1x128xf32>
    %cst_30 = arith.constant 1.000000e+00 : f32
    %51 = vector.broadcast %cst_30 : f32 to vector<1x128xf32>
    %52 = arith.addf %51, %50 : vector<1x128xf32>
    %cst_31 = arith.constant 1.000000e+00 : f32
    %53 = vector.broadcast %cst_31 : f32 to vector<1x128xf32>
    %54 = arith.divf %53, %52 : vector<1x128xf32>
    %55 = arith.mulf %50, %54 : vector<1x128xf32>
    %c0_32 = arith.constant 0 : index
    %c0_33 = arith.constant 0 : index
    %56 = vector.load %arg11[%c0_32, %c0_33] : memref<2x128xf32, #tpu.memory_space<vmem>>, vector<1x128xf32>
    tpu.vector_store %arg11[%c0_32, %c0_33], %55 {strides = array<i32>} : memref<2x128xf32, #tpu.memory_space<vmem>>, vector<1x128xf32>,
    %c1_34 = arith.constant 1 : index
    %c0_35 = arith.constant 0 : index
    %57 = vector.load %arg11[%c1_34, %c0_35] : memref<2x128xf32, #tpu.memory_space<vmem>>, vector<1x128xf32>
    tpu.vector_store %arg11[%c1_34, %c0_35], %54 {strides = array<i32>} : memref<2x128xf32, #tpu.memory_space<vmem>>, vector<1x128xf32>,
    return
  }
  func.func @transform_0(%arg0: i32) -> (i32, i32) {
    %c0_i32 = arith.constant 0 : i32
    %c0_i32_0 = arith.constant 0 : i32
    return %c0_i32, %arg0 : i32, i32
  }
  func.func @transform_1(%arg0: i32) -> (i32, i32) {
    %c0_i32 = arith.constant 0 : i32
    %c0_i32_0 = arith.constant 0 : i32
    return %c0_i32, %arg0 : i32, i32
  }
  func.func @transform_2(%arg0: i32) -> (i32, i32) {
    %c0_i32 = arith.constant 0 : i32
    %c0_i32_0 = arith.constant 0 : i32
    %c0_i32_1 = arith.constant 0 : i32
    return %c0_i32, %c0_i32_0 : i32, i32
  }
  func.func @transform_3(%arg0: i32) -> (i32, i32) {
    %c0_i32 = arith.constant 0 : i32
    %c0_i32_0 = arith.constant 0 : i32
    %c0_i32_1 = arith.constant 0 : i32
    return %c0_i32, %c0_i32_0 : i32, i32
  }
  func.func @transform_4(%arg0: i32) -> (i32, i32) {
    %c0_i32 = arith.constant 0 : i32
    %c0_i32_0 = arith.constant 0 : i32
    %c0_i32_1 = arith.constant 0 : i32
    return %c0_i32, %c0_i32_0 : i32, i32
  }
  func.func @transform_5(%arg0: i32) -> (i32, i32) {
    %c0_i32 = arith.constant 0 : i32
    %c0_i32_0 = arith.constant 0 : i32
    %c0_i32_1 = arith.constant 0 : i32
    return %c0_i32, %c0_i32_0 : i32, i32
  }
  func.func @transform_6(%arg0: i32) -> (i32, i32) {
    %c0_i32 = arith.constant 0 : i32
    %c0_i32_0 = arith.constant 0 : i32
    %c0_i32_1 = arith.constant 0 : i32
    return %c0_i32, %c0_i32_0 : i32, i32
  }
  func.func @transform_7(%arg0: i32) -> (i32, i32) {
    %c0_i32 = arith.constant 0 : i32
    %c0_i32_0 = arith.constant 0 : i32
    %c0_i32_1 = arith.constant 0 : i32
    return %c0_i32, %c0_i32_0 : i32, i32
  }
  func.func @transform_8(%arg0: i32) -> (i32, i32) {
    %c0_i32 = arith.constant 0 : i32
    %c0_i32_0 = arith.constant 0 : i32
    %c0_i32_1 = arith.constant 0 : i32
    return %c0_i32, %c0_i32_0 : i32, i32
  }
  func.func @transform_9(%arg0: i32) -> (i32, i32) {
    %c0_i32 = arith.constant 0 : i32
    %c0_i32_0 = arith.constant 0 : i32
    %c0_i32_1 = arith.constant 0 : i32
    return %c0_i32, %c0_i32_0 : i32, i32
  }
  func.func @transform_10(%arg0: i32) -> (i32, i32) {
    %c0_i32 = arith.constant 0 : i32
    %c0_i32_0 = arith.constant 0 : i32
    return %c0_i32, %arg0 : i32, i32
  }
}

</mosaic_0001>

<llo_original>
// kernel: tpu_custom_call.1
$region0: #{tpu_custom_call.1}
  #allocation0 [shape = 'u32[]', space=smem, size = 0x4, offset = 0x4, fixed_abs, tag = 'smem constant byte address 0x4 - core index']
  #allocation1 [shape = 'u32[144,128]{1,0:T(1,128)}', space=vmem, size = 0x12000, scoped, tag = 'internal scratch']
  %s0 = inlined_call_operand.vmem [shape: s32[2,128], index: 0, kind: input, shape index: {}]
  %s1 = inlined_call_operand.vmem [shape: f32[12,128], index: 1, kind: input, shape index: {}]
  %s2 = inlined_call_operand.vmem [shape: f32[16,12], index: 2, kind: input, shape index: {}]
  %s3 = inlined_call_operand.vmem [shape: f32[32,60], index: 3, kind: input, shape index: {}]
  %s4 = inlined_call_operand.vmem [shape: f32[32,8], index: 4, kind: input, shape index: {}]
  %s5 = inlined_call_operand.vmem [shape: f32[32,16], index: 5, kind: input, shape index: {}]
  %s6 = inlined_call_operand.vmem [shape: f32[16,32], index: 6, kind: input, shape index: {}]
  %s7 = inlined_call_operand.vmem [shape: f32[8,16], index: 7, kind: input, shape index: {}]
  %s8 = inlined_call_operand.vmem [shape: f32[2,8], index: 8, kind: input, shape index: {}]
  %s9 = inlined_call_operand.vmem [shape: f32[42,1], index: 9, kind: input, shape index: {}]
  %s10 = inlined_call_operand.hbm [shape: f32[2,128], index: 10, kind: output, shape index: {}]
  %s11 = sld [smem:[#allocation0]]
  $region50: #{tpu_custom_call.1} parent=0
    _
  %s13 = ssub.s32 1, %s11
  %s14 = scalar_select 0, %s13, %s11
  $region1: #{tpu_custom_call.1} parent=0
    #allocation2 [shape = 'u8[1024]{0}', space=vmem, size = 0x400, scoped, tag = 'output window, operand 0, single buffered']
    #allocation3 [shape = 's32[1]{0}', space=sflag, size = 0x4, scoped, tag = 'scoped memory for tpu_custom_call.1']
    %15 = vsyncpa [#allocation3], 0
    // Predicated region
    $region2: #{tpu_custom_call.1} parent=1 // pred_check
      _
    $region3: #{tpu_custom_call.1} parent=1 // pred_check_branch
      %17 = sbr.rel (0) target = $region5
    $region4: #{tpu_custom_call.1} parent=1 // pred_region
      _
    $region5: #{tpu_custom_call.1} parent=1 // pred_fallthru
      _
    // Predicated region
    $region6: #{tpu_custom_call.1} parent=1 // pred_check
      _
    $region7: #{tpu_custom_call.1} parent=1 // pred_check_branch
      %19 = sbr.rel (0) target = $region9
    $region8: #{tpu_custom_call.1} parent=1 // pred_region
      _
    $region9: #{tpu_custom_call.1} parent=1 // pred_fallthru
      _
    // Predicated region
    $region10: #{tpu_custom_call.1} parent=1 // pred_check
      _
    $region11: #{tpu_custom_call.1} parent=1 // pred_check_branch
      %21 = sbr.rel (0) target = $region13
    $region12: #{tpu_custom_call.1} parent=1 // pred_region
      _
    $region13: #{tpu_custom_call.1} parent=1 // pred_fallthru
      _
    // Predicated region
    $region14: #{tpu_custom_call.1} parent=1 // pred_check
      _
    $region15: #{tpu_custom_call.1} parent=1 // pred_check_branch
      %23 = sbr.rel (0) target = $region17
    $region16: #{tpu_custom_call.1} parent=1 // pred_region
      _
    $region17: #{tpu_custom_call.1} parent=1 // pred_fallthru
      _
    // Predicated region
    $region18: #{tpu_custom_call.1} parent=1 // pred_check
      _
    $region19: #{tpu_custom_call.1} parent=1 // pred_check_branch
      %25 = sbr.rel (0) target = $region21
    $region20: #{tpu_custom_call.1} parent=1 // pred_region
      _
    $region21: #{tpu_custom_call.1} parent=1 // pred_fallthru
      _
    // Predicated region
    $region22: #{tpu_custom_call.1} parent=1 // pred_check
      _
    $region23: #{tpu_custom_call.1} parent=1 // pred_check_branch
      %27 = sbr.rel (0) target = $region25
    $region24: #{tpu_custom_call.1} parent=1 // pred_region
      _
    $region25: #{tpu_custom_call.1} parent=1 // pred_fallthru
      _
    // Predicated region
    $region26: #{tpu_custom_call.1} parent=1 // pred_check
      _
    $region27: #{tpu_custom_call.1} parent=1 // pred_check_branch
      %29 = sbr.rel (0) target = $region29
    $region28: #{tpu_custom_call.1} parent=1 // pred_region
      _
    $region29: #{tpu_custom_call.1} parent=1 // pred_fallthru
      _
    // Predicated region
    $region30: #{tpu_custom_call.1} parent=1 // pred_check
      _
    $region31: #{tpu_custom_call.1} parent=1 // pred_check_branch
      %31 = sbr.rel (0) target = $region33
    $region32: #{tpu_custom_call.1} parent=1 // pred_region
      _
    $region33: #{tpu_custom_call.1} parent=1 // pred_fallthru
      _
    // Predicated region
    $region34: #{tpu_custom_call.1} parent=1 // pred_check
      _
    $region35: #{tpu_custom_call.1} parent=1 // pred_check_branch
      %33 = sbr.rel (0) target = $region37
    $region36: #{tpu_custom_call.1} parent=1 // pred_region
      _
    $region37: #{tpu_custom_call.1} parent=1 // pred_fallthru
      _
    // Predicated region
    $region38: #{tpu_custom_call.1} parent=1 // pred_check
      _
    $region39: #{tpu_custom_call.1} parent=1 // pred_check_branch
      %35 = sbr.rel (0) target = $region41
    $region40: #{tpu_custom_call.1} parent=1 // pred_region
      _
    $region41: #{tpu_custom_call.1} parent=1 // pred_fallthru
      _
    %v36 = vld [vmem:[%s9] sm:$0xff]
    %v37 = vld [vmem:[%s9 + $0x8] sm:$0xff]
    %v38 = vld [vmem:[%s9 + $0x10] sm:$0xff]
    %v39 = vld [vmem:[%s9 + $0x18] sm:$0xff]
    %v40 = vld [vmem:[%s9 + $0x20] sm:$0xff]
    %v41 = vld [vmem:[%s9 + $0x28] sm:$0x3]
    %v42 = vld [vmem:[%s0] sm:$0x1]
    %v43 = vld [vmem:[%s0 + $0x1] sm:$0x1]
    %v44 = vlaneseq
    %v45 = vshrl.u32 %v44, 7
    %v46 = vadd.s32 %v45, 8
    %v47 = vadd.s32 %v45, 16
    %v48 = vadd.s32 %v45, 24
    %v49 = vadd.s32 %v45, 32
    %v50 = vadd.s32 %v45, 40
    %v51 = vadd.s32 %v45, 48
    %v52 = vadd.s32 %v45, 56
    %v53 = vlaneseq
    %v54 = vshrl.u32 %v53, 7
    %v55 = vsub.s32 0, %v54
    %v56 = vrot.slane %v42, %v55
    %vm57 = vcmp.eq.s32.totalorder %v45, %v56
    %vm58 = vcmp.eq.s32.totalorder %v46, %v56
    %vm59 = vcmp.eq.s32.totalorder %v47, %v56
    %vm60 = vcmp.eq.s32.totalorder %v48, %v56
    %vm61 = vcmp.eq.s32.totalorder %v49, %v56
    %vm62 = vcmp.eq.s32.totalorder %v50, %v56
    %vm63 = vcmp.eq.s32.totalorder %v51, %v56
    %vm64 = vcmp.eq.s32.totalorder %v52, %v56
    %v65 = vsel %vm57, 1, 0
    %v66 = vsel %vm58, 1, 0
    %v67 = vsel %vm59, 1, 0
    %v68 = vsel %vm60, 1, 0
    %v69 = vsel %vm61, 1, 0
    %v70 = vsel %vm62, 1, 0
    %v71 = vsel %vm63, 1, 0
    %v72 = vsel %vm64, 1, 0
    %v73 = vcvt.s32.f32 %v65
    %v74 = vcvt.s32.f32 %v66
    %v75 = vcvt.s32.f32 %v67
    %v76 = vcvt.s32.f32 %v68
    %v77 = vcvt.s32.f32 %v69
    %v78 = vcvt.s32.f32 %v70
    %v79 = vcvt.s32.f32 %v71
    %v80 = vcvt.s32.f32 %v72
    %v81 = vlaneseq
    %v82 = vshrl.u32 %v81, 7
    %v83 = vsub.s32 0, %v82
    %v84 = vrot.slane %v43, %v83
    %vm85 = vcmp.eq.s32.totalorder %v45, %v84
    %v86 = vsel %vm85, 1, 0
    %v87 = vcvt.s32.f32 %v86
    %v88 = vld [vmem:[%s3] sm:$0xff]
    %v89 = vld [vmem:[%s3 + $0x8] sm:$0xff]
    %v90 = vld [vmem:[%s3 + $0x10] sm:$0xff]
    %v91 = vld [vmem:[%s3 + $0x18] sm:$0xff]
    %v92 = vld [vmem:[%s4] sm:$0xff]
    %v93 = vld [vmem:[%s4 + $0x8] sm:$0xff]
    %v94 = vld [vmem:[%s4 + $0x10] sm:$0xff]
    %v95 = vld [vmem:[%s4 + $0x18] sm:$0xff]
    %vm96 = vcmask 64512
    %v98 = vsel %vm96, %v92, 0
    %v101 = vsel %vm96, %v93, 0
    %v104 = vsel %vm96, %v94, 0
    %v107 = vsel %vm96, %v95, 0
    %109 = vmatprep.subr.mxu0 0.0
    %110 = vmatpush1.msra.mxu0 %v87
    %111 = vmatprep.subr.mxu0 0.0
    %112 = vmatpush1.msra.mxu0 0.0
    %113 = vmatprep.subr.mxu0 0.0
    %114 = vmatpush1.msra.mxu0 0.0
    %115 = vmatprep.subr.mxu0 0.0
    %116 = vmatpush1.msra.mxu0 0.0
    %117 = vmatprep.subr.mxu0 0.0
    %118 = vmatpush1.msra.mxu0 0.0
    %119 = vmatprep.subr.mxu0 0.0
    %120 = vmatpush1.msra.mxu0 0.0
    %121 = vmatprep.subr.mxu0 0.0
    %122 = vmatpush1.msra.mxu0 0.0
    %123 = vmatprep.subr.mxu0 0.0
    %124 = vmatpush1.msra.mxu0 0.0
    %125 = vmatprep.subr.mxu0 0.0
    %126 = vmatpush1.msra.mxu0 0.0
    %127 = vmatprep.subr.mxu0 0.0
    %128 = vmatpush1.msra.mxu0 0.0
    %129 = vmatprep.subr.mxu0 0.0
    %130 = vmatpush1.msra.mxu0 0.0
    %131 = vmatprep.subr.mxu0 0.0
    %132 = vmatpush1.msra.mxu0 0.0
    %133 = vmatprep.subr.mxu0 0.0
    %134 = vmatpush1.msra.mxu0 0.0
    %135 = vmatprep.subr.mxu0 0.0
    %136 = vmatpush1.msra.mxu0 0.0
    %137 = vmatprep.subr.mxu0 0.0
    %138 = vmatpush1.msra.mxu0 0.0
    %139 = vmatprep.subr.mxu0 0.0
    %140 = vmatpush1.msra.mxu0 0.0
    %141 = vmatprep.subr.mxu0 0.0
    %142 = vmatpush1.msra.mxu0 0.0
    %143 = vmatprep.subr.mxu0 0.0
    %144 = vmatpush1.msra.mxu0 0.0
    %145 = vmatprep.subr.mxu0 0.0
    %146 = vmatpush1.msra.mxu0 0.0
    %147 = vmatprep.subr.mxu0 0.0
    %148 = vmatpush1.msra.mxu0 0.0
    %149 = vmatprep.subr.mxu0 0.0
    %150 = vmatpush1.msra.mxu0 0.0
    %151 = vmatprep.subr.mxu0 0.0
    %152 = vmatpush1.msra.mxu0 0.0
    %153 = vmatprep.subr.mxu0 0.0
    %154 = vmatpush1.msra.mxu0 0.0
    %155 = vmatprep.subr.mxu0 0.0
    %156 = vmatpush1.msra.mxu0 0.0
    %157 = vmatprep.subr.mxu0 0.0
    %158 = vmatpush1.msra.mxu0 0.0
    %159 = vmatprep.subr.mxu0 0.0
    %160 = vmatpush1.msra.mxu0 0.0
    %161 = vmatprep.subr.mxu0 0.0
    %162 = vmatpush1.msra.mxu0 0.0
    %163 = vmatprep.subr.mxu0 0.0
    %164 = vmatpush1.msra.mxu0 0.0
    %165 = vmatprep.subr.mxu0 0.0
    %166 = vmatpush1.msra.mxu0 0.0
    %167 = vmatprep.subr.mxu0 0.0
    %168 = vmatpush1.msra.mxu0 0.0
    %169 = vmatprep.subr.mxu0 0.0
    %170 = vmatpush1.msra.mxu0 0.0
    %171 = vmatprep.subr.mxu0 0.0
    %172 = vmatpush1.msra.mxu0 0.0
    %173 = vmatprep.mubr.f32.mxu0 0.0
    %174 = vmatmul.mubr.f32.gmra.mrb[0].mxu0 %v98
    %v175 = vpop.f32.mrb[0].mxu0
    %v176 = vadd.f32 0.0, %v175
    %v177 = vpop.f32.mrb[0].mxu0
    %178 = vmatprep.mubr.f32.mxu0 0.0
    %179 = vmatmul.mubr.f32.gmra.mrb[0].mxu0 %v101
    %v180 = vpop.f32.mrb[0].mxu0
    %v181 = vadd.f32 0.0, %v180
    %v182 = vpop.f32.mrb[0].mxu0
    %183 = vmatprep.mubr.f32.mxu0 0.0
    %184 = vmatmul.mubr.f32.gmra.mrb[0].mxu0 %v104
    %v185 = vpop.f32.mrb[0].mxu0
    %v186 = vadd.f32 0.0, %v185
    %v187 = vpop.f32.mrb[0].mxu0
    %188 = vmatprep.mubr.f32.mxu0 0.0
    %189 = vmatmul.mubr.f32.gmra.mrb[0].mxu0 %v107
    %v190 = vpop.f32.mrb[0].mxu0
    %v191 = vadd.f32 0.0, %v190
    %v192 = vpop.f32.mrb[0].mxu0
    %193 = vdwg.mxu0
    %vm194 = vcmask 490496
    %v196 = vsel %vm194, %v88, 0
    %v199 = vsel %vm194, %v89, 0
    %v202 = vsel %vm194, %v90, 0
    %v205 = vsel %vm194, %v91, 0
    %vm207 = vcmask 1043456
    %v209 = vsel %vm207, %v80, 0
    %211 = vmatprep.subr.mxu0 0.0
    %212 = vmatpush1.msra.mxu0 %v73
    %213 = vmatprep.subr.mxu0 0.0
    %214 = vmatpush1.msra.mxu0 %v74
    %215 = vmatprep.subr.mxu0 0.0
    %216 = vmatpush1.msra.mxu0 %v75
    %217 = vmatprep.subr.mxu0 0.0
    %218 = vmatpush1.msra.mxu0 %v76
    %219 = vmatprep.subr.mxu0 0.0
    %220 = vmatpush1.msra.mxu0 %v77
    %221 = vmatprep.subr.mxu0 0.0
    %222 = vmatpush1.msra.mxu0 %v78
    %223 = vmatprep.subr.mxu0 0.0
    %224 = vmatpush1.msra.mxu0 %v79
    %225 = vmatprep.subr.mxu0 0.0
    %226 = vmatpush1.msra.mxu0 %v209
    %227 = vmatprep.subr.mxu0 0.0
    %228 = vmatpush1.msra.mxu0 0.0
    %229 = vmatprep.subr.mxu0 0.0
    %230 = vmatpush1.msra.mxu0 0.0
    %231 = vmatprep.subr.mxu0 0.0
    %232 = vmatpush1.msra.mxu0 0.0
    %233 = vmatprep.subr.mxu0 0.0
    %234 = vmatpush1.msra.mxu0 0.0
    %235 = vmatprep.subr.mxu0 0.0
    %236 = vmatpush1.msra.mxu0 0.0
    %237 = vmatprep.subr.mxu0 0.0
    %238 = vmatpush1.msra.mxu0 0.0
    %239 = vmatprep.subr.mxu0 0.0
    %240 = vmatpush1.msra.mxu0 0.0
    %241 = vmatprep.subr.mxu0 0.0
    %242 = vmatpush1.msra.mxu0 0.0
    %243 = vmatprep.subr.mxu0 0.0
    %244 = vmatpush1.msra.mxu0 0.0
    %245 = vmatprep.subr.mxu0 0.0
    %246 = vmatpush1.msra.mxu0 0.0
    %247 = vmatprep.subr.mxu0 0.0
    %248 = vmatpush1.msra.mxu0 0.0
    %249 = vmatprep.subr.mxu0 0.0
    %250 = vmatpush1.msra.mxu0 0.0
    %251 = vmatprep.subr.mxu0 0.0
    %252 = vmatpush1.msra.mxu0 0.0
    %253 = vmatprep.subr.mxu0 0.0
    %254 = vmatpush1.msra.mxu0 0.0
    %255 = vmatprep.subr.mxu0 0.0
    %256 = vmatpush1.msra.mxu0 0.0
    %257 = vmatprep.subr.mxu0 0.0
    %258 = vmatpush1.msra.mxu0 0.0
    %259 = vmatprep.subr.mxu0 0.0
    %260 = vmatpush1.msra.mxu0 0.0
    %261 = vmatprep.subr.mxu0 0.0
    %262 = vmatpush1.msra.mxu0 0.0
    %263 = vmatprep.subr.mxu0 0.0
    %264 = vmatpush1.msra.mxu0 0.0
    %265 = vmatprep.subr.mxu0 0.0
    %266 = vmatpush1.msra.mxu0 0.0
    %267 = vmatprep.subr.mxu0 0.0
    %268 = vmatpush1.msra.mxu0 0.0
    %269 = vmatprep.subr.mxu0 0.0
    %270 = vmatpush1.msra.mxu0 0.0
    %271 = vmatprep.subr.mxu0 0.0
    %272 = vmatpush1.msra.mxu0 0.0
    %273 = vmatprep.subr.mxu0 0.0
    %274 = vmatpush1.msra.mxu0 0.0
    %275 = vmatprep.mubr.f32.mxu0 0.0
    %276 = vmatmul.mubr.f32.gmra.mrb[0].mxu0 %v196
    %v277 = vpop.f32.mrb[0].mxu0
    %v278 = vadd.f32 %v176, %v277
    %v279 = vpop.f32.mrb[0].mxu0
    %280 = vmatprep.mubr.f32.mxu0 0.0
    %281 = vmatmul.mubr.f32.gmra.mrb[0].mxu0 %v199
    %v282 = vpop.f32.mrb[0].mxu0
    %v283 = vadd.f32 %v181, %v282
    %v284 = vpop.f32.mrb[0].mxu0
    %285 = vmatprep.mubr.f32.mxu0 0.0
    %286 = vmatmul.mubr.f32.gmra.mrb[0].mxu0 %v202
    %v287 = vpop.f32.mrb[0].mxu0
    %v288 = vadd.f32 %v186, %v287
    %v289 = vpop.f32.mrb[0].mxu0
    %290 = vmatprep.mubr.f32.mxu0 0.0
    %291 = vmatmul.mubr.f32.gmra.mrb[0].mxu0 %v205
    %v292 = vpop.f32.mrb[0].mxu0
    %v293 = vadd.f32 %v191, %v292
    %v294 = vpop.f32.mrb[0].mxu0
    %295 = vdwg.mxu0
    %v296 = vld [vmem:[%s2] sm:$0xff]
    %v297 = vld [vmem:[%s2 + $0x8] sm:$0xff]
    %v298 = vld [vmem:[%s1] sm:$0xff]
    %v299 = vld [vmem:[%s1 + $0x8] sm:$0xf]
    %301 = vset.pattern.permute.xlu0 0
    %302 = vperm.xlu0 %301, %v36
    %v303 = vpop.permute.xlu0 %302
    %306 = vset.pattern.permute.xlu0 0
    %307 = vperm.xlu0 %306, %v37
    %v308 = vpop.permute.xlu0 %307
    %vm310 = vcmask 97280
    %v312 = vsel %vm310, %v296, 0
    %v315 = vsel %vm310, %v297, 0
    %v318 = vsel %vm207, %v299, 0
    %320 = vmatprep.subr.mxu0 0.0
    %321 = vmatpush1.msra.mxu0 %v298
    %322 = vmatprep.subr.mxu0 0.0
    %323 = vmatpush1.msra.mxu0 %v318
    %324 = vmatprep.subr.mxu0 0.0
    %325 = vmatpush1.msra.mxu0 0.0
    %326 = vmatprep.subr.mxu0 0.0
    %327 = vmatpush1.msra.mxu0 0.0
    %328 = vmatprep.subr.mxu0 0.0
    %329 = vmatpush1.msra.mxu0 0.0
    %330 = vmatprep.subr.mxu0 0.0
    %331 = vmatpush1.msra.mxu0 0.0
    %332 = vmatprep.subr.mxu0 0.0
    %333 = vmatpush1.msra.mxu0 0.0
    %334 = vmatprep.subr.mxu0 0.0
    %335 = vmatpush1.msra.mxu0 0.0
    %336 = vmatprep.subr.mxu0 0.0
    %337 = vmatpush1.msra.mxu0 0.0
    %338 = vmatprep.subr.mxu0 0.0
    %339 = vmatpush1.msra.mxu0 0.0
    %340 = vmatprep.subr.mxu0 0.0
    %341 = vmatpush1.msra.mxu0 0.0
    %342 = vmatprep.subr.mxu0 0.0
    %343 = vmatpush1.msra.mxu0 0.0
    %344 = vmatprep.subr.mxu0 0.0
    %345 = vmatpush1.msra.mxu0 0.0
    %346 = vmatprep.subr.mxu0 0.0
    %347 = vmatpush1.msra.mxu0 0.0
    %348 = vmatprep.subr.mxu0 0.0
    %349 = vmatpush1.msra.mxu0 0.0
    %350 = vmatprep.subr.mxu0 0.0
    %351 = vmatpush1.msra.mxu0 0.0
    %352 = vmatprep.subr.mxu0 0.0
    %353 = vmatpush1.msra.mxu0 0.0
    %354 = vmatprep.subr.mxu0 0.0
    %355 = vmatpush1.msra.mxu0 0.0
    %356 = vmatprep.subr.mxu0 0.0
    %357 = vmatpush1.msra.mxu0 0.0
    %358 = vmatprep.subr.mxu0 0.0
    %359 = vmatpush1.msra.mxu0 0.0
    %360 = vmatprep.subr.mxu0 0.0
    %361 = vmatpush1.msra.mxu0 0.0
    %362 = vmatprep.subr.mxu0 0.0
    %363 = vmatpush1.msra.mxu0 0.0
    %364 = vmatprep.subr.mxu0 0.0
    %365 = vmatpush1.msra.mxu0 0.0
    %366 = vmatprep.subr.mxu0 0.0
    %367 = vmatpush1.msra.mxu0 0.0
    %368 = vmatprep.subr.mxu0 0.0
    %369 = vmatpush1.msra.mxu0 0.0
    %370 = vmatprep.subr.mxu0 0.0
    %371 = vmatpush1.msra.mxu0 0.0
    %372 = vmatprep.subr.mxu0 0.0
    %373 = vmatpush1.msra.mxu0 0.0
    %374 = vmatprep.subr.mxu0 0.0
    %375 = vmatpush1.msra.mxu0 0.0
    %376 = vmatprep.subr.mxu0 0.0
    %377 = vmatpush1.msra.mxu0 0.0
    %378 = vmatprep.subr.mxu0 0.0
    %379 = vmatpush1.msra.mxu0 0.0
    %380 = vmatprep.subr.mxu0 0.0
    %381 = vmatpush1.msra.mxu0 0.0
    %382 = vmatprep.subr.mxu0 0.0
    %383 = vmatpush1.msra.mxu0 0.0
    %384 = vmatprep.mubr.f32.mxu0 0.0
    %385 = vmatmul.mubr.f32.gmra.mrb[0].mxu0 %v312
    %v386 = vpop.f32.mrb[0].mxu0
    %v387 = vadd.f32 %v303, %v386
    %v388 = vpop.f32.mrb[0].mxu0
    %389 = vmatprep.mubr.f32.mxu0 0.0
    %390 = vmatmul.mubr.f32.gmra.mrb[0].mxu0 %v315
    %v391 = vpop.f32.mrb[0].mxu0
    %v392 = vadd.f32 %v308, %v391
    %v393 = vpop.f32.mrb[0].mxu0
    %394 = vdwg.mxu0
    %v395 = vtanh.pop %v387
    %v396 = vtanh.pop %v392
    %v397 = vld [vmem:[%s5] sm:$0xff]
    %v398 = vld [vmem:[%s5 + $0x8] sm:$0xff]
    %v399 = vld [vmem:[%s5 + $0x10] sm:$0xff]
    %v400 = vld [vmem:[%s5 + $0x18] sm:$0xff]
    %vm401 = vcmask 130048
    %v403 = vsel %vm401, %v397, 0
    %v406 = vsel %vm401, %v398, 0
    %v409 = vsel %vm401, %v399, 0
    %v412 = vsel %vm401, %v400, 0
    %414 = vmatprep.subr.mxu0 0.0
    %415 = vmatpush1.msra.mxu0 %v395
    %416 = vmatprep.subr.mxu0 0.0
    %417 = vmatpush1.msra.mxu0 %v396
    %418 = vmatprep.subr.mxu0 0.0
    %419 = vmatpush1.msra.mxu0 0.0
    %420 = vmatprep.subr.mxu0 0.0
    %421 = vmatpush1.msra.mxu0 0.0
    %422 = vmatprep.subr.mxu0 0.0
    %423 = vmatpush1.msra.mxu0 0.0
    %424 = vmatprep.subr.mxu0 0.0
    %425 = vmatpush1.msra.mxu0 0.0
    %426 = vmatprep.subr.mxu0 0.0
    %427 = vmatpush1.msra.mxu0 0.0
    %428 = vmatprep.subr.mxu0 0.0
    %429 = vmatpush1.msra.mxu0 0.0
    %430 = vmatprep.subr.mxu0 0.0
    %431 = vmatpush1.msra.mxu0 0.0
    %432 = vmatprep.subr.mxu0 0.0
    %433 = vmatpush1.msra.mxu0 0.0
    %434 = vmatprep.subr.mxu0 0.0
    %435 = vmatpush1.msra.mxu0 0.0
    %436 = vmatprep.subr.mxu0 0.0
    %437 = vmatpush1.msra.mxu0 0.0
    %438 = vmatprep.subr.mxu0 0.0
    %439 = vmatpush1.msra.mxu0 0.0
    %440 = vmatprep.subr.mxu0 0.0
    %441 = vmatpush1.msra.mxu0 0.0
    %442 = vmatprep.subr.mxu0 0.0
    %443 = vmatpush1.msra.mxu0 0.0
    %444 = vmatprep.subr.mxu0 0.0
    %445 = vmatpush1.msra.mxu0 0.0
    %446 = vmatprep.subr.mxu0 0.0
    %447 = vmatpush1.msra.mxu0 0.0
    %448 = vmatprep.subr.mxu0 0.0
    %449 = vmatpush1.msra.mxu0 0.0
    %450 = vmatprep.subr.mxu0 0.0
    %451 = vmatpush1.msra.mxu0 0.0
    %452 = vmatprep.subr.mxu0 0.0
    %453 = vmatpush1.msra.mxu0 0.0
    %454 = vmatprep.subr.mxu0 0.0
    %455 = vmatpush1.msra.mxu0 0.0
    %456 = vmatprep.subr.mxu0 0.0
    %457 = vmatpush1.msra.mxu0 0.0
    %458 = vmatprep.subr.mxu0 0.0
    %459 = vmatpush1.msra.mxu0 0.0
    %460 = vmatprep.subr.mxu0 0.0
    %461 = vmatpush1.msra.mxu0 0.0
    %462 = vmatprep.subr.mxu0 0.0
    %463 = vmatpush1.msra.mxu0 0.0
    %464 = vmatprep.subr.mxu0 0.0
    %465 = vmatpush1.msra.mxu0 0.0
    %466 = vmatprep.subr.mxu0 0.0
    %467 = vmatpush1.msra.mxu0 0.0
    %468 = vmatprep.subr.mxu0 0.0
    %469 = vmatpush1.msra.mxu0 0.0
    %470 = vmatprep.subr.mxu0 0.0
    %471 = vmatpush1.msra.mxu0 0.0
    %472 = vmatprep.subr.mxu0 0.0
    %473 = vmatpush1.msra.mxu0 0.0
    %474 = vmatprep.subr.mxu0 0.0
    %475 = vmatpush1.msra.mxu0 0.0
    %476 = vmatprep.subr.mxu0 0.0
    %477 = vmatpush1.msra.mxu0 0.0
    %478 = vmatprep.mubr.f32.mxu0 0.0
    %479 = vmatmul.mubr.f32.gmra.mrb[0].mxu0 %v403
    %v480 = vpop.f32.mrb[0].mxu0
    %v481 = vadd.f32 0.0, %v480
    %v482 = vpop.f32.mrb[0].mxu0
    %483 = vmatprep.mubr.f32.mxu0 0.0
    %484 = vmatmul.mubr.f32.gmra.mrb[0].mxu0 %v406
    %v485 = vpop.f32.mrb[0].mxu0
    %v486 = vadd.f32 0.0, %v485
    %v487 = vpop.f32.mrb[0].mxu0
    %488 = vmatprep.mubr.f32.mxu0 0.0
    %489 = vmatmul.mubr.f32.gmra.mrb[0].mxu0 %v409
    %v490 = vpop.f32.mrb[0].mxu0
    %v491 = vadd.f32 0.0, %v490
    %v492 = vpop.f32.mrb[0].mxu0
    %493 = vmatprep.mubr.f32.mxu0 0.0
    %494 = vmatmul.mubr.f32.gmra.mrb[0].mxu0 %v412
    %v495 = vpop.f32.mrb[0].mxu0
    %v496 = vadd.f32 0.0, %v495
    %v497 = vpop.f32.mrb[0].mxu0
    %498 = vdwg.mxu0
    %v499 = vadd.f32 %v278, %v481
    %v500 = vadd.f32 %v283, %v486
    %v501 = vadd.f32 %v288, %v491
    %v502 = vadd.f32 %v293, %v496
    %v503 = vtanh.pop %v499
    %v504 = vtanh.pop %v500
    %v505 = vtanh.pop %v501
    %v506 = vtanh.pop %v502
    %v507 = vld [vmem:[%s6] sm:$0xff]
    %v508 = vld [vmem:[%s6 + $0x8] sm:$0xff]
    %510 = vset.pattern.permute.xlu0 0
    %511 = vperm.xlu0 %510, %v38
    %v512 = vpop.permute.xlu0 %511
    %515 = vset.pattern.permute.xlu0 0
    %516 = vperm.xlu0 %515, %v39
    %v517 = vpop.permute.xlu0 %516
    %vm519 = vcmask 261120
    %v521 = vsel %vm519, %v507, 0
    %v524 = vsel %vm519, %v508, 0
    %526 = vmatprep.subr.mxu0 0.0
    %527 = vmatpush1.msra.mxu0 %v503
    %528 = vmatprep.subr.mxu0 0.0
    %529 = vmatpush1.msra.mxu0 %v504
    %530 = vmatprep.subr.mxu0 0.0
    %531 = vmatpush1.msra.mxu0 %v505
    %532 = vmatprep.subr.mxu0 0.0
    %533 = vmatpush1.msra.mxu0 %v506
    %534 = vmatprep.subr.mxu0 0.0
    %535 = vmatpush1.msra.mxu0 0.0
    %536 = vmatprep.subr.mxu0 0.0
    %537 = vmatpush1.msra.mxu0 0.0
    %538 = vmatprep.subr.mxu0 0.0
    %539 = vmatpush1.msra.mxu0 0.0
    %540 = vmatprep.subr.mxu0 0.0
    %541 = vmatpush1.msra.mxu0 0.0
    %542 = vmatprep.subr.mxu0 0.0
    %543 = vmatpush1.msra.mxu0 0.0
    %544 = vmatprep.subr.mxu0 0.0
    %545 = vmatpush1.msra.mxu0 0.0
    %546 = vmatprep.subr.mxu0 0.0
    %547 = vmatpush1.msra.mxu0 0.0
    %548 = vmatprep.subr.mxu0 0.0
    %549 = vmatpush1.msra.mxu0 0.0
    %550 = vmatprep.subr.mxu0 0.0
    %551 = vmatpush1.msra.mxu0 0.0
    %552 = vmatprep.subr.mxu0 0.0
    %553 = vmatpush1.msra.mxu0 0.0
    %554 = vmatprep.subr.mxu0 0.0
    %555 = vmatpush1.msra.mxu0 0.0
    %556 = vmatprep.subr.mxu0 0.0
    %557 = vmatpush1.msra.mxu0 0.0
    %558 = vmatprep.subr.mxu0 0.0
    %559 = vmatpush1.msra.mxu0 0.0
    %560 = vmatprep.subr.mxu0 0.0
    %561 = vmatpush1.msra.mxu0 0.0
    %562 = vmatprep.subr.mxu0 0.0
    %563 = vmatpush1.msra.mxu0 0.0
    %564 = vmatprep.subr.mxu0 0.0
    %565 = vmatpush1.msra.mxu0 0.0
    %566 = vmatprep.subr.mxu0 0.0
    %567 = vmatpush1.msra.mxu0 0.0
    %568 = vmatprep.subr.mxu0 0.0
    %569 = vmatpush1.msra.mxu0 0.0
    %570 = vmatprep.subr.mxu0 0.0
    %571 = vmatpush1.msra.mxu0 0.0
    %572 = vmatprep.subr.mxu0 0.0
    %573 = vmatpush1.msra.mxu0 0.0
    %574 = vmatprep.subr.mxu0 0.0
    %575 = vmatpush1.msra.mxu0 0.0
    %576 = vmatprep.subr.mxu0 0.0
    %577 = vmatpush1.msra.mxu0 0.0
    %578 = vmatprep.subr.mxu0 0.0
    %579 = vmatpush1.msra.mxu0 0.0
    %580 = vmatprep.subr.mxu0 0.0
    %581 = vmatpush1.msra.mxu0 0.0
    %582 = vmatprep.subr.mxu0 0.0
    %583 = vmatpush1.msra.mxu0 0.0
    %584 = vmatprep.subr.mxu0 0.0
    %585 = vmatpush1.msra.mxu0 0.0
    %586 = vmatprep.subr.mxu0 0.0
    %587 = vmatpush1.msra.mxu0 0.0
    %588 = vmatprep.subr.mxu0 0.0
    %589 = vmatpush1.msra.mxu0 0.0
    %590 = vmatprep.mubr.f32.mxu0 0.0
    %591 = vmatmul.mubr.f32.gmra.mrb[0].mxu0 %v521
    %v592 = vpop.f32.mrb[0].mxu0
    %v593 = vadd.f32 %v512, %v592
    %v594 = vpop.f32.mrb[0].mxu0
    %595 = vmatprep.mubr.f32.mxu0 0.0
    %596 = vmatmul.mubr.f32.gmra.mrb[0].mxu0 %v524
    %v597 = vpop.f32.mrb[0].mxu0
    %v598 = vadd.f32 %v517, %v597
    %v599 = vpop.f32.mrb[0].mxu0
    %600 = vdwg.mxu0
    %v601 = vtanh.pop %v593
    %v602 = vtanh.pop %v598
    %v603 = vld [vmem:[%s7] sm:$0xff]
    %605 = vset.pattern.permute.xlu0 0
    %606 = vperm.xlu0 %605, %v40
    %v607 = vpop.permute.xlu0 %606
    %v610 = vsel %vm401, %v603, 0
    %612 = vmatprep.subr.mxu0 0.0
    %613 = vmatpush1.msra.mxu0 %v601
    %614 = vmatprep.subr.mxu0 0.0
    %615 = vmatpush1.msra.mxu0 %v602
    %616 = vmatprep.subr.mxu0 0.0
    %617 = vmatpush1.msra.mxu0 0.0
    %618 = vmatprep.subr.mxu0 0.0
    %619 = vmatpush1.msra.mxu0 0.0
    %620 = vmatprep.subr.mxu0 0.0
    %621 = vmatpush1.msra.mxu0 0.0
    %622 = vmatprep.subr.mxu0 0.0
    %623 = vmatpush1.msra.mxu0 0.0
    %624 = vmatprep.subr.mxu0 0.0
    %625 = vmatpush1.msra.mxu0 0.0
    %626 = vmatprep.subr.mxu0 0.0
    %627 = vmatpush1.msra.mxu0 0.0
    %628 = vmatprep.subr.mxu0 0.0
    %629 = vmatpush1.msra.mxu0 0.0
    %630 = vmatprep.subr.mxu0 0.0
    %631 = vmatpush1.msra.mxu0 0.0
    %632 = vmatprep.subr.mxu0 0.0
    %633 = vmatpush1.msra.mxu0 0.0
    %634 = vmatprep.subr.mxu0 0.0
    %635 = vmatpush1.msra.mxu0 0.0
    %636 = vmatprep.subr.mxu0 0.0
    %637 = vmatpush1.msra.mxu0 0.0
    %638 = vmatprep.subr.mxu0 0.0
    %639 = vmatpush1.msra.mxu0 0.0
    %640 = vmatprep.subr.mxu0 0.0
    %641 = vmatpush1.msra.mxu0 0.0
    %642 = vmatprep.subr.mxu0 0.0
    %643 = vmatpush1.msra.mxu0 0.0
    %644 = vmatprep.subr.mxu0 0.0
    %645 = vmatpush1.msra.mxu0 0.0
    %646 = vmatprep.subr.mxu0 0.0
    %647 = vmatpush1.msra.mxu0 0.0
    %648 = vmatprep.subr.mxu0 0.0
    %649 = vmatpush1.msra.mxu0 0.0
    %650 = vmatprep.subr.mxu0 0.0
    %651 = vmatpush1.msra.mxu0 0.0
    %652 = vmatprep.subr.mxu0 0.0
    %653 = vmatpush1.msra.mxu0 0.0
    %654 = vmatprep.subr.mxu0 0.0
    %655 = vmatpush1.msra.mxu0 0.0
    %656 = vmatprep.subr.mxu0 0.0
    %657 = vmatpush1.msra.mxu0 0.0
    %658 = vmatprep.subr.mxu0 0.0
    %659 = vmatpush1.msra.mxu0 0.0
    %660 = vmatprep.subr.mxu0 0.0
    %661 = vmatpush1.msra.mxu0 0.0
    %662 = vmatprep.subr.mxu0 0.0
    %663 = vmatpush1.msra.mxu0 0.0
    %664 = vmatprep.subr.mxu0 0.0
    %665 = vmatpush1.msra.mxu0 0.0
    %666 = vmatprep.subr.mxu0 0.0
    %667 = vmatpush1.msra.mxu0 0.0
    %668 = vmatprep.subr.mxu0 0.0
    %669 = vmatpush1.msra.mxu0 0.0
    %670 = vmatprep.subr.mxu0 0.0
    %671 = vmatpush1.msra.mxu0 0.0
    %672 = vmatprep.subr.mxu0 0.0
    %673 = vmatpush1.msra.mxu0 0.0
    %674 = vmatprep.subr.mxu0 0.0
    %675 = vmatpush1.msra.mxu0 0.0
    %676 = vmatprep.mubr.f32.mxu0 0.0
    %677 = vmatmul.mubr.f32.gmra.mrb[0].mxu0 %v610
    %v678 = vpop.f32.mrb[0].mxu0
    %v679 = vadd.f32 %v607, %v678
    %v680 = vpop.f32.mrb[0].mxu0
    %681 = vdwg.mxu0
    %v682 = vtanh.pop %v679
    %v683 = vld [vmem:[%s8] sm:$0x3]
    %685 = vset.pattern.permute.xlu0 0
    %686 = vperm.xlu0 %685, %v41
    %v687 = vpop.permute.xlu0 %686
    %v690 = vsel %vm96, %v683, 0
    %692 = vmatprep.subr.mxu0 0.0
    %693 = vmatpush1.msra.mxu0 %v682
    %694 = vmatprep.subr.mxu0 0.0
    %695 = vmatpush1.msra.mxu0 0.0
    %696 = vmatprep.subr.mxu0 0.0
    %697 = vmatpush1.msra.mxu0 0.0
    %698 = vmatprep.subr.mxu0 0.0
    %699 = vmatpush1.msra.mxu0 0.0
    %700 = vmatprep.subr.mxu0 0.0
    %701 = vmatpush1.msra.mxu0 0.0
    %702 = vmatprep.subr.mxu0 0.0
    %703 = vmatpush1.msra.mxu0 0.0
    %704 = vmatprep.subr.mxu0 0.0
    %705 = vmatpush1.msra.mxu0 0.0
    %706 = vmatprep.subr.mxu0 0.0
    %707 = vmatpush1.msra.mxu0 0.0
    %708 = vmatprep.subr.mxu0 0.0
    %709 = vmatpush1.msra.mxu0 0.0
    %710 = vmatprep.subr.mxu0 0.0
    %711 = vmatpush1.msra.mxu0 0.0
    %712 = vmatprep.subr.mxu0 0.0
    %713 = vmatpush1.msra.mxu0 0.0
    %714 = vmatprep.subr.mxu0 0.0
    %715 = vmatpush1.msra.mxu0 0.0
    %716 = vmatprep.subr.mxu0 0.0
    %717 = vmatpush1.msra.mxu0 0.0
    %718 = vmatprep.subr.mxu0 0.0
    %719 = vmatpush1.msra.mxu0 0.0
    %720 = vmatprep.subr.mxu0 0.0
    %721 = vmatpush1.msra.mxu0 0.0
    %722 = vmatprep.subr.mxu0 0.0
    %723 = vmatpush1.msra.mxu0 0.0
    %724 = vmatprep.subr.mxu0 0.0
    %725 = vmatpush1.msra.mxu0 0.0
    %726 = vmatprep.subr.mxu0 0.0
    %727 = vmatpush1.msra.mxu0 0.0
    %728 = vmatprep.subr.mxu0 0.0
    %729 = vmatpush1.msra.mxu0 0.0
    %730 = vmatprep.subr.mxu0 0.0
    %731 = vmatpush1.msra.mxu0 0.0
    %732 = vmatprep.subr.mxu0 0.0
    %733 = vmatpush1.msra.mxu0 0.0
    %734 = vmatprep.subr.mxu0 0.0
    %735 = vmatpush1.msra.mxu0 0.0
    %736 = vmatprep.subr.mxu0 0.0
    %737 = vmatpush1.msra.mxu0 0.0
    %738 = vmatprep.subr.mxu0 0.0
    %739 = vmatpush1.msra.mxu0 0.0
    %740 = vmatprep.subr.mxu0 0.0
    %741 = vmatpush1.msra.mxu0 0.0
    %742 = vmatprep.subr.mxu0 0.0
    %743 = vmatpush1.msra.mxu0 0.0
    %744 = vmatprep.subr.mxu0 0.0
    %745 = vmatpush1.msra.mxu0 0.0
    %746 = vmatprep.subr.mxu0 0.0
    %747 = vmatpush1.msra.mxu0 0.0
    %748 = vmatprep.subr.mxu0 0.0
    %749 = vmatpush1.msra.mxu0 0.0
    %750 = vmatprep.subr.mxu0 0.0
    %751 = vmatpush1.msra.mxu0 0.0
    %752 = vmatprep.subr.mxu0 0.0
    %753 = vmatpush1.msra.mxu0 0.0
    %754 = vmatprep.subr.mxu0 0.0
    %755 = vmatpush1.msra.mxu0 0.0
    %756 = vmatprep.mubr.f32.mxu0 0.0
    %757 = vmatmul.mubr.f32.gmra.mrb[0].mxu0 %v690
    %v758 = vpop.f32.mrb[0].mxu0
    %v759 = vadd.f32 %v687, %v758
    %v760 = vpop.f32.mrb[0].mxu0
    %761 = vdwg.mxu0
    %v763 = vrot.slane %v759, 7
    %v765 = vsub.f32 %v759, %v763
    %v766 = vsub.f32 0.0, %v765
    %v767 = vmul.f32 %v766, 1.442695
    %v768 = vpow.pop %v767
    %v769 = vadd.f32 %v768, 1.0
    %v770 = vrcp.pop %v769
    %v771 = vmul.f32 1.0, %v770
    %v772 = vmul.f32 %v768, %v771
    %773 = vst [vmem:[#allocation2 - $0x1] sm:$0x2] %v772
    %774 = vst [vmem:[#allocation2] sm:$0x2] %v771
    // Predicated region
    $region42: #{tpu_custom_call.1} parent=1 // pred_check
      _
    $region43: #{tpu_custom_call.1} parent=1 // pred_check_branch
      %776 = sbr.rel (0) target = $region45
    $region44: #{tpu_custom_call.1} parent=1 // pred_region
      %s778 = ssub.s32 32, 32
      %779 = vsyncadd [#allocation3], %s778
      %s781 = sshll.u32 [#allocation2], 4
      %s782 = int_to_ptr.vmem [resolvable:$true] %s781
      %784 = dma.vmem_to_hbm [thread:$0]  %s782, 32, %s10, [#allocation3]
    $region45: #{tpu_custom_call.1} parent=1 // pred_fallthru
      _
    // Predicated region
    $region46: #{tpu_custom_call.1} parent=1 // pred_check
      _
    $region47: #{tpu_custom_call.1} parent=1 // pred_check_branch
      %786 = sbr.rel (0) target = $region49
    $region48: #{tpu_custom_call.1} parent=1 // pred_region
      %787 = dma.done [#allocation3], 32
    $region49: #{tpu_custom_call.1} parent=1 // pred_fallthru
      _
    %788 = vsyncpa [#allocation3], 1

</llo_original>
